<compile_context>
chip_gen: v6e
topology: v6e:2x2x1
jax: 0.10.0
libtpu: 0.0.40
codegen_flags: <defaults>
</compile_context>

<pallas_src>
import functools

import jax
import jax.numpy as jnp
from jax.experimental import pallas as pl
from jax.experimental.pallas import tpu as pltpu


# ---------------- Kernel 1: phi_x + phi_tf + concat + input-gate matmul ---- #
def _feature_gi_kernel(src_ref, tf_ref, wx_ref, bx_ref, wt_ref, bt_ref,
                       wix_ref, wit_ref, bi_ref, gi_ref):
    dot = functools.partial(jnp.dot, preferred_element_type=jnp.float32)
    x_h = jnp.maximum(dot(src_ref[...], wx_ref[...]) + bx_ref[...], 0.0)
    t_h = jnp.maximum(dot(tf_ref[...], wt_ref[...]) + bt_ref[...], 0.0)
    # gi = concat([x_h, tf_h], -1) @ W_ih.T + b_i  (concat realized as two dots)
    gi_ref[...] = (dot(x_h, wix_ref[...]) + dot(t_h, wit_ref[...])
                   + bi_ref[...])


def compute_gi(src_tm2d, tf_tm2d, wx, bx, wt, bt, wix, wit, bi, *, tm=512):
    """src_tm2d: (T*B, xd) time-major rows; returns gi (T*B, 3H)."""
    rows, xd = src_tm2d.shape
    td = tf_tm2d.shape[1]
    g3 = wix.shape[1]

    tm = min(tm, rows)
    nr = pl.cdiv(rows, tm)
    rows_p = nr * tm
    if rows_p != rows:
        src_tm2d = jnp.pad(src_tm2d, ((0, rows_p - rows), (0, 0)))
        tf_tm2d = jnp.pad(tf_tm2d, ((0, rows_p - rows), (0, 0)))

    bx2 = bx.reshape(1, -1)
    bt2 = bt.reshape(1, -1)
    bi2 = bi.reshape(1, -1)

    def full(a):
        return pl.BlockSpec(a.shape, lambda i: (0, 0))

    gi = pl.pallas_call(
        _feature_gi_kernel,
        out_shape=jax.ShapeDtypeStruct((rows_p, g3), jnp.float32),
        grid_spec=pltpu.PrefetchScalarGridSpec(
            num_scalar_prefetch=0,
            grid=(nr,),
            in_specs=[
                pl.BlockSpec((tm, xd), lambda i: (i, 0)),
                pl.BlockSpec((tm, td), lambda i: (i, 0)),
                full(wx), full(bx2), full(wt), full(bt2),
                full(wix), full(wit), full(bi2),
            ],
            out_specs=pl.BlockSpec((tm, g3), lambda i: (i, 0)),
        ),
        compiler_params=pltpu.CompilerParams(
            dimension_semantics=("parallel",),
            vmem_limit_bytes=32 * 1024 * 1024),
    )(src_tm2d, tf_tm2d, wx, bx2, wt, bt2, wix, wit, bi2)
    return gi[:rows]


# ---------------- Kernel 2: GRU recurrence (chunked over time) -------------- #
def _gru_kernel(gi_ref, wh_ref, bhn_ref, h_ref, *, T, Tc, H):
    c = pl.program_id(0)

    @pl.when(c == 0)
    def _():
        h_ref[...] = jnp.zeros_like(h_ref)

    def step(i, h):
        t = c * Tc + i
        gi_t = gi_ref[i]                                              # (B, 3H)
        gh = jnp.dot(h, wh_ref[...], preferred_element_type=jnp.float32)
        r = jax.nn.sigmoid(gi_t[:, 0 * H:1 * H] + gh[:, 0 * H:1 * H])
        z = jax.nn.sigmoid(gi_t[:, 1 * H:2 * H] + gh[:, 1 * H:2 * H])
        n = jnp.tanh(gi_t[:, 2 * H:3 * H] + r * (gh[:, 2 * H:3 * H]
                                                 + bhn_ref[...]))
        h_new = (1.0 - z) * n + z * h
        return jnp.where(t < T, h_new, h)   # mask padded timesteps

    # Hidden state is carried in the resident output block across chunks.
    h_ref[...] = jax.lax.fori_loop(0, Tc, step, h_ref[...], unroll=Tc <= 32)


def gru_last_hidden(gi_tm, w_hh, b_hh, *, tc=128):
    """gi_tm: (T, B, 3H) precomputed input gates (time-major).

    w_hh: (3H, H) PyTorch layout, gate order (r, z, n). Returns (B, H).
    """
    T, B, g3 = gi_tm.shape
    H = w_hh.shape[1]
    wh = w_hh.T                           # (H, 3H) fused hidden-gate weights
    bhn = b_hh[2 * H:3 * H].reshape(1, H)

    Tc = min(tc, T)
    nc = pl.cdiv(T, Tc)
    Tp = nc * Tc
    if Tp != T:
        gi_tm = jnp.pad(gi_tm, ((0, Tp - T), (0, 0), (0, 0)))

    kernel = functools.partial(_gru_kernel, T=T, Tc=Tc, H=H)
    return pl.pallas_call(
        kernel,
        out_shape=jax.ShapeDtypeStruct((B, H), jnp.float32),
        grid_spec=pltpu.PrefetchScalarGridSpec(
            num_scalar_prefetch=0,
            grid=(nc,),
            in_specs=[
                pl.BlockSpec((Tc, B, g3), lambda c: (c, 0, 0)),
                pl.BlockSpec((H, g3), lambda c: (0, 0)),
                pl.BlockSpec((1, H), lambda c: (0, 0)),
            ],
            out_specs=pl.BlockSpec((B, H), lambda c: (0, 0)),
        ),
        compiler_params=pltpu.CompilerParams(
            dimension_semantics=("arbitrary",)),  # recurrence -> sequential
    )(gi_tm, wh, bhn)


# ------------------------------ Encoder_TS --------------------------------- #
def encoder_ts_forward(src, tf, params):
    """Pallas version of Encoder_TS.forward (use_GRU=True). Returns (1, B, H)."""
    B, T, xd = src.shape
    td = tf.shape[-1]
    H = params["w_hh"].shape[1]

    # Time-major row layout for the fused feature/gi kernel (transpose the
    # small raw inputs, not the (B,T,2H) activation).
    src_tm = jnp.transpose(src, (1, 0, 2)).reshape(T * B, xd)
    tf_tm = jnp.transpose(tf, (1, 0, 2)).reshape(T * B, td)

    w_ih, b_ih, b_hh = params["w_ih"], params["b_ih"], params["b_hh"]
    wix = w_ih[:, :H].T                   # (H, 3H): input-gate weights for x_h
    wit = w_ih[:, H:2 * H].T              # (H, 3H): input-gate weights for tf_h
    bi = jnp.concatenate([                # r,z: fold b_ih+b_hh; n: b_in only
        b_ih[0 * H:1 * H] + b_hh[0 * H:1 * H],
        b_ih[1 * H:2 * H] + b_hh[1 * H:2 * H],
        b_ih[2 * H:3 * H],
    ])

    gi = compute_gi(src_tm, tf_tm, params["wx"], params["bx"],
                    params["wt"], params["bt"], wix, wit, bi)
    gi_tm = gi.reshape(T, B, 3 * H)

    h_last = gru_last_hidden(gi_tm, params["w_hh"], params["b_hh"])
    return h_last[None]                   # (1, B, H), like PyTorch `hidden`


# -------------------------- pure-JAX reference ----------------------------- #
def ref_forward(src, tf, params):
    x_h = jax.nn.relu(src @ params["wx"] + params["bx"])
    tf_h = jax.nn.relu(tf @ params["wt"] + params["bt"])
    joint = jnp.concatenate([x_h, tf_h], -1)
    H = params["w_hh"].shape[1]

    def step(h, x_t):
        gi = x_t @ params["w_ih"].T + params["b_ih"]
        gh = h @ params["w_hh"].T + params["b_hh"]
        r = jax.nn.sigmoid(gi[:, :H] + gh[:, :H])
        z = jax.nn.sigmoid(gi[:, H:2 * H] + gh[:, H:2 * H])
        n = jnp.tanh(gi[:, 2 * H:] + r * gh[:, 2 * H:])
        return (1.0 - z) * n + z * h, None

    joint_tm = jnp.transpose(joint, (1, 0, 2))
    h0 = jnp.zeros((src.shape[0], H), jnp.float32)
    h_last, _ = jax.lax.scan(step, h0, joint_tm)
    return h_last[None]


# --------------------------------- main ------------------------------------ #
if __name__ == "__main__":
    B, T, x_dim, tf_dim, h_dim = 2, 8, 4, 3, 32

    key = jax.random.PRNGKey(0)
    ks = jax.random.split(key, 10)
    params = {
        # phi_x: Linear(x_dim, h_dim) + ReLU
        "wx": 0.2 * jax.random.normal(ks[0], (x_dim, h_dim), jnp.float32),
        "bx": 0.1 * jax.random.normal(ks[1], (h_dim,), jnp.float32),
        # phi_tf: Linear(tf_dim, h_dim) + ReLU
        "wt": 0.2 * jax.random.normal(ks[2], (tf_dim, h_dim), jnp.float32),
        "bt": 0.1 * jax.random.normal(ks[3], (h_dim,), jnp.float32),
        # GRU(2*h_dim -> h_dim), PyTorch layout, gate order (r, z, n)
        "w_ih": 0.2 * jax.random.normal(ks[4], (3 * h_dim, 2 * h_dim), jnp.float32),
        "w_hh": 0.2 * jax.random.normal(ks[5], (3 * h_dim, h_dim), jnp.float32),
        "b_ih": 0.1 * jax.random.normal(ks[6], (3 * h_dim,), jnp.float32),
        "b_hh": 0.1 * jax.random.normal(ks[7], (3 * h_dim,), jnp.float32),
    }

    src = jax.random.normal(ks[8], (B, T, x_dim), jnp.float32)
    tf = jax.random.normal(ks[9], (B, T, tf_dim), jnp.float32)

    hidden = jax.block_until_ready(encoder_ts_forward(src, tf, params))
    hidden_ref = jax.block_until_ready(ref_forward(src, tf, params))

    assert hidden.shape == (1, B, h_dim), hidden.shape
    assert jnp.allclose(hidden, hidden_ref, rtol=1e-3, atol=1e-3), (
        jnp.max(jnp.abs(hidden - hidden_ref)))
    print("KERNEL_OK")
</pallas_src>

<mosaic_0001>
module attributes {stable_mosaic.version = 11 : i64} {
  func.func @_feature_gi_kernel(%arg0: i32, %arg1: memref<16x4xf32, #tpu.memory_space<vmem>>, %arg2: memref<16x3xf32, #tpu.memory_space<vmem>>, %arg3: memref<4x32xf32, #tpu.memory_space<vmem>>, %arg4: memref<1x32xf32, #tpu.memory_space<vmem>>, %arg5: memref<3x32xf32, #tpu.memory_space<vmem>>, %arg6: memref<1x32xf32, #tpu.memory_space<vmem>>, %arg7: memref<32x96xf32, #tpu.memory_space<vmem>>, %arg8: memref<32x96xf32, #tpu.memory_space<vmem>>, %arg9: memref<1x96xf32, #tpu.memory_space<vmem>>, %arg10: memref<16x96xf32, #tpu.memory_space<vmem>>) attributes {dimension_semantics = [#tpu.dimension_semantics<parallel>], iteration_bounds = array<i64: 1>, scalar_prefetch = 0 : i64, scratch_operands = 0 : i64, tpu.core_type = #tpu.core_type<tc>, window_params = [{transform_indices = @transform_0, window_bounds = array<i64: 16, 4>}, {transform_indices = @transform_1, window_bounds = array<i64: 16, 3>}, {pipeline_mode = #tpu.pipeline_mode<synchronous>, transform_indices = @transform_2, window_bounds = array<i64: 4, 32>}, {pipeline_mode = #tpu.pipeline_mode<synchronous>, transform_indices = @transform_3, window_bounds = array<i64: 1, 32>}, {pipeline_mode = #tpu.pipeline_mode<synchronous>, transform_indices = @transform_4, window_bounds = array<i64: 3, 32>}, {pipeline_mode = #tpu.pipeline_mode<synchronous>, transform_indices = @transform_5, window_bounds = array<i64: 1, 32>}, {pipeline_mode = #tpu.pipeline_mode<synchronous>, transform_indices = @transform_6, window_bounds = array<i64: 32, 96>}, {pipeline_mode = #tpu.pipeline_mode<synchronous>, transform_indices = @transform_7, window_bounds = array<i64: 32, 96>}, {pipeline_mode = #tpu.pipeline_mode<synchronous>, transform_indices = @transform_8, window_bounds = array<i64: 1, 96>}, {transform_indices = @transform_9, window_bounds = array<i64: 16, 96>}]} {
    %c0 = arith.constant 0 : index
    %c0_0 = arith.constant 0 : index
    %0 = vector.load %arg1[%c0, %c0_0] : memref<16x4xf32, #tpu.memory_space<vmem>>, vector<16x4xf32>
    %c0_1 = arith.constant 0 : index
    %c0_2 = arith.constant 0 : index
    %1 = vector.load %arg3[%c0_1, %c0_2] : memref<4x32xf32, #tpu.memory_space<vmem>>, vector<4x32xf32>
    %cst = arith.constant dense<0.000000e+00> : vector<16x32xf32>
    %2 = tpu.matmul %0, %1, %cst {dimension_numbers = #tpu.dot_dimension_numbers<[1], [0], [0], [1], [0, 0, 1, 1], [], []>} : vector<16x4xf32>, vector<4x32xf32>, vector<16x32xf32> -> vector<16x32xf32>
    %c0_3 = arith.constant 0 : index
    %c0_4 = arith.constant 0 : index
    %3 = vector.load %arg4[%c0_3, %c0_4] : memref<1x32xf32, #tpu.memory_space<vmem>>, vector<1x32xf32>
    %4 = vector.broadcast %3 : vector<1x32xf32> to vector<16x32xf32>
    %5 = arith.addf %2, %4 : vector<16x32xf32>
    %cst_5 = arith.constant 0.000000e+00 : f32
    %6 = vector.broadcast %cst_5 : f32 to vector<16x32xf32>
    %7 = arith.maximumf %5, %6 : vector<16x32xf32>
    %c0_6 = arith.constant 0 : index
    %c0_7 = arith.constant 0 : index
    %8 = vector.load %arg2[%c0_6, %c0_7] : memref<16x3xf32, #tpu.memory_space<vmem>>, vector<16x3xf32>
    %c0_8 = arith.constant 0 : index
    %c0_9 = arith.constant 0 : index
    %9 = vector.load %arg5[%c0_8, %c0_9] : memref<3x32xf32, #tpu.memory_space<vmem>>, vector<3x32xf32>
    %cst_10 = arith.constant dense<0.000000e+00> : vector<16x32xf32>
    %10 = tpu.matmul %8, %9, %cst_10 {dimension_numbers = #tpu.dot_dimension_numbers<[1], [0], [0], [1], [0, 0, 1, 1], [], []>} : vector<16x3xf32>, vector<3x32xf32>, vector<16x32xf32> -> vector<16x32xf32>
    %c0_11 = arith.constant 0 : index
    %c0_12 = arith.constant 0 : index
    %11 = vector.load %arg6[%c0_11, %c0_12] : memref<1x32xf32, #tpu.memory_space<vmem>>, vector<1x32xf32>
    %12 = vector.broadcast %11 : vector<1x32xf32> to vector<16x32xf32>
    %13 = arith.addf %10, %12 : vector<16x32xf32>
    %cst_13 = arith.constant 0.000000e+00 : f32
    %14 = vector.broadcast %cst_13 : f32 to vector<16x32xf32>
    %15 = arith.maximumf %13, %14 : vector<16x32xf32>
    %c0_14 = arith.constant 0 : index
    %c0_15 = arith.constant 0 : index
    %16 = vector.load %arg7[%c0_14, %c0_15] : memref<32x96xf32, #tpu.memory_space<vmem>>, vector<32x96xf32>
    %cst_16 = arith.constant dense<0.000000e+00> : vector<16x96xf32>
    %17 = tpu.matmul %7, %16, %cst_16 {dimension_numbers = #tpu.dot_dimension_numbers<[1], [0], [0], [1], [0, 0, 1, 1], [], []>} : vector<16x32xf32>, vector<32x96xf32>, vector<16x96xf32> -> vector<16x96xf32>
    %c0_17 = arith.constant 0 : index
    %c0_18 = arith.constant 0 : index
    %18 = vector.load %arg8[%c0_17, %c0_18] : memref<32x96xf32, #tpu.memory_space<vmem>>, vector<32x96xf32>
    %cst_19 = arith.constant dense<0.000000e+00> : vector<16x96xf32>
    %19 = tpu.matmul %15, %18, %cst_19 {dimension_numbers = #tpu.dot_dimension_numbers<[1], [0], [0], [1], [0, 0, 1, 1], [], []>} : vector<16x32xf32>, vector<32x96xf32>, vector<16x96xf32> -> vector<16x96xf32>
    %20 = arith.addf %17, %19 : vector<16x96xf32>
    %c0_20 = arith.constant 0 : index
    %c0_21 = arith.constant 0 : index
    %21 = vector.load %arg9[%c0_20, %c0_21] : memref<1x96xf32, #tpu.memory_space<vmem>>, vector<1x96xf32>
    %22 = vector.broadcast %21 : vector<1x96xf32> to vector<16x96xf32>
    %23 = arith.addf %20, %22 : vector<16x96xf32>
    %c0_22 = arith.constant 0 : index
    %c0_23 = arith.constant 0 : index
    %24 = vector.load %arg10[%c0_22, %c0_23] : memref<16x96xf32, #tpu.memory_space<vmem>>, vector<16x96xf32>
    tpu.vector_store %arg10[%c0_22, %c0_23], %23 {strides = array<i32>} : memref<16x96xf32, #tpu.memory_space<vmem>>, vector<16x96xf32>,
    return
  }
  func.func @transform_0(%arg0: i32) -> (i32, i32) {
    %c0_i32 = arith.constant 0 : i32
    %c0_i32_0 = arith.constant 0 : i32
    return %arg0, %c0_i32 : i32, i32
  }
  func.func @transform_1(%arg0: i32) -> (i32, i32) {
    %c0_i32 = arith.constant 0 : i32
    %c0_i32_0 = arith.constant 0 : i32
    return %arg0, %c0_i32 : i32, i32
  }
  func.func @transform_2(%arg0: i32) -> (i32, i32) {
    %c0_i32 = arith.constant 0 : i32
    %c0_i32_0 = arith.constant 0 : i32
    %c0_i32_1 = arith.constant 0 : i32
    return %c0_i32, %c0_i32_0 : i32, i32
  }
  func.func @transform_3(%arg0: i32) -> (i32, i32) {
    %c0_i32 = arith.constant 0 : i32
    %c0_i32_0 = arith.constant 0 : i32
    %c0_i32_1 = arith.constant 0 : i32
    return %c0_i32, %c0_i32_0 : i32, i32
  }
  func.func @transform_4(%arg0: i32) -> (i32, i32) {
    %c0_i32 = arith.constant 0 : i32
    %c0_i32_0 = arith.constant 0 : i32
    %c0_i32_1 = arith.constant 0 : i32
    return %c0_i32, %c0_i32_0 : i32, i32
  }
  func.func @transform_5(%arg0: i32) -> (i32, i32) {
    %c0_i32 = arith.constant 0 : i32
    %c0_i32_0 = arith.constant 0 : i32
    %c0_i32_1 = arith.constant 0 : i32
    return %c0_i32, %c0_i32_0 : i32, i32
  }
  func.func @transform_6(%arg0: i32) -> (i32, i32) {
    %c0_i32 = arith.constant 0 : i32
    %c0_i32_0 = arith.constant 0 : i32
    %c0_i32_1 = arith.constant 0 : i32
    return %c0_i32, %c0_i32_0 : i32, i32
  }
  func.func @transform_7(%arg0: i32) -> (i32, i32) {
    %c0_i32 = arith.constant 0 : i32
    %c0_i32_0 = arith.constant 0 : i32
    %c0_i32_1 = arith.constant 0 : i32
    return %c0_i32, %c0_i32_0 : i32, i32
  }
  func.func @transform_8(%arg0: i32) -> (i32, i32) {
    %c0_i32 = arith.constant 0 : i32
    %c0_i32_0 = arith.constant 0 : i32
    %c0_i32_1 = arith.constant 0 : i32
    return %c0_i32, %c0_i32_0 : i32, i32
  }
  func.func @transform_9(%arg0: i32) -> (i32, i32) {
    %c0_i32 = arith.constant 0 : i32
    %c0_i32_0 = arith.constant 0 : i32
    return %arg0, %c0_i32 : i32, i32
  }
}

</mosaic_0001>

<llo_original>
// kernel: tpu_custom_call.1
$region0: #{tpu_custom_call.1}
  #allocation0 [shape = 'u32[]', space=smem, size = 0x4, offset = 0x4, fixed_abs, tag = 'smem constant byte address 0x4 - core index']
  #allocation1 [shape = 'u32[144,128]{1,0:T(1,128)}', space=vmem, size = 0x12000, scoped, tag = 'internal scratch']
  %s0 = inlined_call_operand.vmem [shape: f32[16,4], index: 0, kind: input, shape index: {}]
  %s1 = inlined_call_operand.vmem [shape: f32[16,3], index: 1, kind: input, shape index: {}]
  %s2 = inlined_call_operand.vmem [shape: f32[4,32], index: 2, kind: input, shape index: {}]
  %s3 = inlined_call_operand.vmem [shape: f32[1,32], index: 3, kind: input, shape index: {}]
  %s4 = inlined_call_operand.vmem [shape: f32[3,32], index: 4, kind: input, shape index: {}]
  %s5 = inlined_call_operand.vmem [shape: f32[1,32], index: 5, kind: input, shape index: {}]
  %s6 = inlined_call_operand.vmem [shape: f32[32,96], index: 6, kind: input, shape index: {}]
  %s7 = inlined_call_operand.hbm [shape: f32[32,96], index: 7, kind: input, shape index: {}]
  %s8 = inlined_call_operand.vmem [shape: f32[1,96], index: 8, kind: input, shape index: {}]
  %s9 = inlined_call_operand.hbm [shape: f32[16,96], index: 9, kind: output, shape index: {}]
  %s10 = sld [smem:[#allocation0]]
  $region50: #{tpu_custom_call.1} parent=0
    _
  %s12 = ssub.s32 1, %s10
  %s13 = scalar_select 0, %s12, %s10
  $region1: #{tpu_custom_call.1} parent=0
    #allocation2 [shape = 'u8[16384]{0}', space=vmem, size = 0x4000, scoped, tag = 'input window, operand 7, single buffered']
    #allocation3 [shape = 's32[1]{0}', space=sflag, size = 0x4, scoped, tag = 'scoped memory for tpu_custom_call.1']
    #allocation4 [shape = 's32[1]{0}', space=sflag, size = 0x4, scoped, tag = 'scoped memory for tpu_custom_call.1']
    #allocation5 [shape = 'u8[8192]{0}', space=vmem, size = 0x2000, scoped, tag = 'output window, operand 0, single buffered']
    %14 = vsyncpa [#allocation3], 0
    %15 = vsyncpa [#allocation4], 0
    // Predicated region
    $region2: #{tpu_custom_call.1} parent=1 // pred_check
      _
    $region3: #{tpu_custom_call.1} parent=1 // pred_check_branch
      %17 = sbr.rel (0) target = $region5
    $region4: #{tpu_custom_call.1} parent=1 // pred_region
      _
    $region5: #{tpu_custom_call.1} parent=1 // pred_fallthru
      _
    // Predicated region
    $region6: #{tpu_custom_call.1} parent=1 // pred_check
      _
    $region7: #{tpu_custom_call.1} parent=1 // pred_check_branch
      %19 = sbr.rel (0) target = $region9
    $region8: #{tpu_custom_call.1} parent=1 // pred_region
      _
    $region9: #{tpu_custom_call.1} parent=1 // pred_fallthru
      _
    // Predicated region
    $region10: #{tpu_custom_call.1} parent=1 // pred_check
      _
    $region11: #{tpu_custom_call.1} parent=1 // pred_check_branch
      %21 = sbr.rel (0) target = $region13
    $region12: #{tpu_custom_call.1} parent=1 // pred_region
      _
    $region13: #{tpu_custom_call.1} parent=1 // pred_fallthru
      _
    // Predicated region
    $region14: #{tpu_custom_call.1} parent=1 // pred_check
      _
    $region15: #{tpu_custom_call.1} parent=1 // pred_check_branch
      %23 = sbr.rel (0) target = $region17
    $region16: #{tpu_custom_call.1} parent=1 // pred_region
      _
    $region17: #{tpu_custom_call.1} parent=1 // pred_fallthru
      _
    // Predicated region
    $region18: #{tpu_custom_call.1} parent=1 // pred_check
      _
    $region19: #{tpu_custom_call.1} parent=1 // pred_check_branch
      %25 = sbr.rel (0) target = $region21
    $region20: #{tpu_custom_call.1} parent=1 // pred_region
      _
    $region21: #{tpu_custom_call.1} parent=1 // pred_fallthru
      _
    // Predicated region
    $region22: #{tpu_custom_call.1} parent=1 // pred_check
      _
    $region23: #{tpu_custom_call.1} parent=1 // pred_check_branch
      %27 = sbr.rel (0) target = $region25
    $region24: #{tpu_custom_call.1} parent=1 // pred_region
      _
    $region25: #{tpu_custom_call.1} parent=1 // pred_fallthru
      _
    // Predicated region
    $region26: #{tpu_custom_call.1} parent=1 // pred_check
      _
    $region27: #{tpu_custom_call.1} parent=1 // pred_check_branch
      %29 = sbr.rel (0) target = $region29
    $region28: #{tpu_custom_call.1} parent=1 // pred_region
      _
    $region29: #{tpu_custom_call.1} parent=1 // pred_fallthru
      _
    // Predicated region
    $region30: #{tpu_custom_call.1} parent=1 // pred_check
      _
    $region31: #{tpu_custom_call.1} parent=1 // pred_check_branch
      %31 = sbr.rel (0) target = $region33
    $region32: #{tpu_custom_call.1} parent=1 // pred_region
      %s33 = ssub.s32 512, 512
      %34 = vsyncadd [#allocation3], %s33
      %s35 = sshll.u32 [#allocation2], 4
      %s36 = int_to_ptr.vmem [resolvable:$true] %s35
      %41 = dma.hbm_to_vmem [thread:$0]  %s7, 512, %s36, [#allocation3], 128, 128, 8
    $region33: #{tpu_custom_call.1} parent=1 // pred_fallthru
      _
    // Predicated region
    $region34: #{tpu_custom_call.1} parent=1 // pred_check
      _
    $region35: #{tpu_custom_call.1} parent=1 // pred_check_branch
      %43 = sbr.rel (0) target = $region37
    $region36: #{tpu_custom_call.1} parent=1 // pred_region
      _
    $region37: #{tpu_custom_call.1} parent=1 // pred_fallthru
      _
    // Predicated region
    $region38: #{tpu_custom_call.1} parent=1 // pred_check
      _
    $region39: #{tpu_custom_call.1} parent=1 // pred_check_branch
      %45 = sbr.rel (0) target = $region41
    $region40: #{tpu_custom_call.1} parent=1 // pred_region
      %46 = dma.done [#allocation3], 512
    $region41: #{tpu_custom_call.1} parent=1 // pred_fallthru
      _
    %v47 = vld [vmem:[%s0] sm:$0xff]
    %v48 = vld [vmem:[%s0 + $0x8] sm:$0xff]
    %v49 = vld [vmem:[%s2] sm:$0xf]
    %v50 = vld [vmem:[%s3] sm:$0x1]
    %v52 = vlaneseq
    %v53 = vshrl.u32 %v52, 7
    %v54 = vsub.s32 0, %v53
    %v55 = vrot.slane %v50, %v54
    %vm57 = vcmask 31744
    %v59 = vsel %vm57, %v47, 0
    %v62 = vsel %vm57, %v48, 0
    %vm64 = vcmask 1043456
    %v66 = vsel %vm64, %v49, 0
    %68 = vmatprep.subr.mxu0 0.0
    %69 = vmatpush1.msra.mxu0 0.0
    %70 = vmatprep.subr.mxu0 0.0
    %71 = vmatpush1.msra.mxu0 0.0
    %72 = vmatprep.subr.mxu0 0.0
    %73 = vmatpush1.msra.mxu0 0.0
    %74 = vmatprep.subr.mxu0 0.0
    %75 = vmatpush1.msra.mxu0 0.0
    %76 = vmatprep.subr.mxu0 0.0
    %77 = vmatpush1.msra.mxu0 0.0
    %78 = vmatprep.subr.mxu0 0.0
    %79 = vmatpush1.msra.mxu0 0.0
    %80 = vmatprep.subr.mxu0 0.0
    %81 = vmatpush1.msra.mxu0 0.0
    %82 = vmatprep.subr.mxu0 0.0
    %83 = vmatpush1.msra.mxu0 0.0
    %84 = vmatprep.subr.mxu0 0.0
    %85 = vmatpush1.msra.mxu0 0.0
    %86 = vmatprep.subr.mxu0 0.0
    %87 = vmatpush1.msra.mxu0 0.0
    %88 = vmatprep.subr.mxu0 0.0
    %89 = vmatpush1.msra.mxu0 0.0
    %90 = vmatprep.subr.mxu0 0.0
    %91 = vmatpush1.msra.mxu0 0.0
    %92 = vmatprep.subr.mxu0 0.0
    %93 = vmatpush1.msra.mxu0 0.0
    %94 = vmatprep.subr.mxu0 0.0
    %95 = vmatpush1.msra.mxu0 0.0
    %96 = vmatprep.subr.mxu0 0.0
    %97 = vmatpush1.msra.mxu0 0.0
    %98 = vmatprep.subr.mxu0 0.0
    %99 = vmatpush1.msra.mxu0 %v66
    %100 = vmatprep.subr.mxu0 0.0
    %101 = vmatpush2.msra.mxu0 0.0
    %102 = vmatprep.subr.mxu0 0.0
    %103 = vmatpush2.msra.mxu0 0.0
    %104 = vmatprep.subr.mxu0 0.0
    %105 = vmatpush2.msra.mxu0 0.0
    %106 = vmatprep.subr.mxu0 0.0
    %107 = vmatpush2.msra.mxu0 0.0
    %108 = vmatprep.subr.mxu0 0.0
    %109 = vmatpush2.msra.mxu0 0.0
    %110 = vmatprep.subr.mxu0 0.0
    %111 = vmatpush2.msra.mxu0 0.0
    %112 = vmatprep.subr.mxu0 0.0
    %113 = vmatpush2.msra.mxu0 0.0
    %114 = vmatprep.subr.mxu0 0.0
    %115 = vmatpush2.msra.mxu0 0.0
    %116 = vmatprep.subr.mxu0 0.0
    %117 = vmatpush2.msra.mxu0 0.0
    %118 = vmatprep.subr.mxu0 0.0
    %119 = vmatpush2.msra.mxu0 0.0
    %120 = vmatprep.subr.mxu0 0.0
    %121 = vmatpush2.msra.mxu0 0.0
    %122 = vmatprep.subr.mxu0 0.0
    %123 = vmatpush2.msra.mxu0 0.0
    %124 = vmatprep.subr.mxu0 0.0
    %125 = vmatpush2.msra.mxu0 0.0
    %126 = vmatprep.subr.mxu0 0.0
    %127 = vmatpush2.msra.mxu0 0.0
    %128 = vmatprep.subr.mxu0 0.0
    %129 = vmatpush2.msra.mxu0 0.0
    %130 = vmatprep.subr.mxu0 0.0
    %131 = vmatpush2.msra.mxu0 0.0
    %132 = vmatprep.mubr.f32.mxu0 0.0
    %133 = vmatmul.mubr.f32.gmra.mxu0 %v59
    %v134 = vpop.f32.mrf.mxu0
    %v135 = vadd.f32 %v55, %v134
    %v136 = vpop.f32.mrf.mxu0
    %137 = vmatprep.mubr.f32.mxu0 0.0
    %138 = vmatmul.mubr.f32.gmra.mxu0 %v62
    %v139 = vpop.f32.mrf.mxu0
    %v140 = vadd.f32 %v55, %v139
    %v141 = vpop.f32.mrf.mxu0
    %142 = vdwg.mxu0
    %v143 = vmax.f32 %v135, 0.0
    %v144 = vmax.f32 %v140, 0.0
    %v145 = vld [vmem:[%s1] sm:$0xff]
    %v146 = vld [vmem:[%s1 + $0x8] sm:$0xff]
    %v147 = vld [vmem:[%s4] sm:$0x7]
    %v148 = vld [vmem:[%s5] sm:$0x1]
    %v150 = vlaneseq
    %v151 = vshrl.u32 %v150, 7
    %v152 = vsub.s32 0, %v151
    %v153 = vrot.slane %v148, %v152
    %vm155 = vcmask 23552
    %v157 = vsel %vm155, %v145, 0
    %v160 = vsel %vm155, %v146, 0
    %vm162 = vcmask 1042432
    %v164 = vsel %vm162, %v147, 0
    %166 = vmatprep.subr.mxu0 0.0
    %167 = vmatpush1.msra.mxu0 0.0
    %168 = vmatprep.subr.mxu0 0.0
    %169 = vmatpush1.msra.mxu0 0.0
    %170 = vmatprep.subr.mxu0 0.0
    %171 = vmatpush1.msra.mxu0 0.0
    %172 = vmatprep.subr.mxu0 0.0
    %173 = vmatpush1.msra.mxu0 0.0
    %174 = vmatprep.subr.mxu0 0.0
    %175 = vmatpush1.msra.mxu0 0.0
    %176 = vmatprep.subr.mxu0 0.0
    %177 = vmatpush1.msra.mxu0 0.0
    %178 = vmatprep.subr.mxu0 0.0
    %179 = vmatpush1.msra.mxu0 0.0
    %180 = vmatprep.subr.mxu0 0.0
    %181 = vmatpush1.msra.mxu0 0.0
    %182 = vmatprep.subr.mxu0 0.0
    %183 = vmatpush1.msra.mxu0 0.0
    %184 = vmatprep.subr.mxu0 0.0
    %185 = vmatpush1.msra.mxu0 0.0
    %186 = vmatprep.subr.mxu0 0.0
    %187 = vmatpush1.msra.mxu0 0.0
    %188 = vmatprep.subr.mxu0 0.0
    %189 = vmatpush1.msra.mxu0 0.0
    %190 = vmatprep.subr.mxu0 0.0
    %191 = vmatpush1.msra.mxu0 0.0
    %192 = vmatprep.subr.mxu0 0.0
    %193 = vmatpush1.msra.mxu0 0.0
    %194 = vmatprep.subr.mxu0 0.0
    %195 = vmatpush1.msra.mxu0 0.0
    %196 = vmatprep.subr.mxu0 0.0
    %197 = vmatpush1.msra.mxu0 %v164
    %198 = vmatprep.subr.mxu0 0.0
    %199 = vmatpush2.msra.mxu0 0.0
    %200 = vmatprep.subr.mxu0 0.0
    %201 = vmatpush2.msra.mxu0 0.0
    %202 = vmatprep.subr.mxu0 0.0
    %203 = vmatpush2.msra.mxu0 0.0
    %204 = vmatprep.subr.mxu0 0.0
    %205 = vmatpush2.msra.mxu0 0.0
    %206 = vmatprep.subr.mxu0 0.0
    %207 = vmatpush2.msra.mxu0 0.0
    %208 = vmatprep.subr.mxu0 0.0
    %209 = vmatpush2.msra.mxu0 0.0
    %210 = vmatprep.subr.mxu0 0.0
    %211 = vmatpush2.msra.mxu0 0.0
    %212 = vmatprep.subr.mxu0 0.0
    %213 = vmatpush2.msra.mxu0 0.0
    %214 = vmatprep.subr.mxu0 0.0
    %215 = vmatpush2.msra.mxu0 0.0
    %216 = vmatprep.subr.mxu0 0.0
    %217 = vmatpush2.msra.mxu0 0.0
    %218 = vmatprep.subr.mxu0 0.0
    %219 = vmatpush2.msra.mxu0 0.0
    %220 = vmatprep.subr.mxu0 0.0
    %221 = vmatpush2.msra.mxu0 0.0
    %222 = vmatprep.subr.mxu0 0.0
    %223 = vmatpush2.msra.mxu0 0.0
    %224 = vmatprep.subr.mxu0 0.0
    %225 = vmatpush2.msra.mxu0 0.0
    %226 = vmatprep.subr.mxu0 0.0
    %227 = vmatpush2.msra.mxu0 0.0
    %228 = vmatprep.subr.mxu0 0.0
    %229 = vmatpush2.msra.mxu0 0.0
    %230 = vmatprep.mubr.f32.mxu0 0.0
    %231 = vmatmul.mubr.f32.gmra.mxu0 %v157
    %v232 = vpop.f32.mrf.mxu0
    %v233 = vadd.f32 %v153, %v232
    %v234 = vpop.f32.mrf.mxu0
    %235 = vmatprep.mubr.f32.mxu0 0.0
    %236 = vmatmul.mubr.f32.gmra.mxu0 %v160
    %v237 = vpop.f32.mrf.mxu0
    %v238 = vadd.f32 %v153, %v237
    %v239 = vpop.f32.mrf.mxu0
    %240 = vdwg.mxu0
    %v241 = vmax.f32 %v233, 0.0
    %v242 = vmax.f32 %v238, 0.0
    %v243 = vld [vmem:[%s6] sm:$0xff]
    %v244 = vld [vmem:[%s6 + $0x8] sm:$0xff]
    %v245 = vld [vmem:[%s6 + $0x10] sm:$0xff]
    %v246 = vld [vmem:[%s6 + $0x18] sm:$0xff]
    %v247 = vld [vmem:[#allocation2] sm:$0xff]
    %v248 = vld [vmem:[#allocation2 + $0x8] sm:$0xff]
    %v249 = vld [vmem:[#allocation2 + $0x10] sm:$0xff]
    %v250 = vld [vmem:[#allocation2 + $0x18] sm:$0xff]
    %vm251 = vcmask 261120
    %v253 = vsel %vm251, %v241, 0
    %v256 = vsel %vm251, %v242, 0
    %258 = vmatprep.subr.mxu0 0.0
    %259 = vmatpush1.msra.mxu0 0.0
    %260 = vmatprep.subr.mxu0 0.0
    %261 = vmatpush1.msra.mxu0 0.0
    %262 = vmatprep.subr.mxu0 0.0
    %263 = vmatpush1.msra.mxu0 0.0
    %264 = vmatprep.subr.mxu0 0.0
    %265 = vmatpush1.msra.mxu0 0.0
    %266 = vmatprep.subr.mxu0 0.0
    %267 = vmatpush1.msra.mxu0 0.0
    %268 = vmatprep.subr.mxu0 0.0
    %269 = vmatpush1.msra.mxu0 0.0
    %270 = vmatprep.subr.mxu0 0.0
    %271 = vmatpush1.msra.mxu0 0.0
    %272 = vmatprep.subr.mxu0 0.0
    %273 = vmatpush1.msra.mxu0 0.0
    %274 = vmatprep.subr.mxu0 0.0
    %275 = vmatpush1.msra.mxu0 0.0
    %276 = vmatprep.subr.mxu0 0.0
    %277 = vmatpush1.msra.mxu0 0.0
    %278 = vmatprep.subr.mxu0 0.0
    %279 = vmatpush1.msra.mxu0 0.0
    %280 = vmatprep.subr.mxu0 0.0
    %281 = vmatpush1.msra.mxu0 0.0
    %282 = vmatprep.subr.mxu0 0.0
    %283 = vmatpush1.msra.mxu0 %v250
    %284 = vmatprep.subr.mxu0 0.0
    %285 = vmatpush1.msra.mxu0 %v249
    %286 = vmatprep.subr.mxu0 0.0
    %287 = vmatpush1.msra.mxu0 %v248
    %288 = vmatprep.subr.mxu0 0.0
    %289 = vmatpush1.msra.mxu0 %v247
    %290 = vmatprep.subr.mxu0 0.0
    %291 = vmatpush2.msra.mxu0 0.0
    %292 = vmatprep.subr.mxu0 0.0
    %293 = vmatpush2.msra.mxu0 0.0
    %294 = vmatprep.subr.mxu0 0.0
    %295 = vmatpush2.msra.mxu0 0.0
    %296 = vmatprep.subr.mxu0 0.0
    %297 = vmatpush2.msra.mxu0 0.0
    %298 = vmatprep.subr.mxu0 0.0
    %299 = vmatpush2.msra.mxu0 0.0
    %300 = vmatprep.subr.mxu0 0.0
    %301 = vmatpush2.msra.mxu0 0.0
    %302 = vmatprep.subr.mxu0 0.0
    %303 = vmatpush2.msra.mxu0 0.0
    %304 = vmatprep.subr.mxu0 0.0
    %305 = vmatpush2.msra.mxu0 0.0
    %306 = vmatprep.subr.mxu0 0.0
    %307 = vmatpush2.msra.mxu0 0.0
    %308 = vmatprep.subr.mxu0 0.0
    %309 = vmatpush2.msra.mxu0 0.0
    %310 = vmatprep.subr.mxu0 0.0
    %311 = vmatpush2.msra.mxu0 0.0
    %312 = vmatprep.subr.mxu0 0.0
    %313 = vmatpush2.msra.mxu0 0.0
    %314 = vmatprep.subr.mxu0 0.0
    %315 = vmatpush2.msra.mxu0 0.0
    %316 = vmatprep.subr.mxu0 0.0
    %317 = vmatpush2.msra.mxu0 0.0
    %318 = vmatprep.subr.mxu0 0.0
    %319 = vmatpush2.msra.mxu0 0.0
    %320 = vmatprep.subr.mxu0 0.0
    %321 = vmatpush2.msra.mxu0 0.0
    %322 = vmatprep.mubr.f32.mxu0 0.0
    %323 = vmatmul.mubr.f32.gmra.mxu0 %v253
    %v324 = vpop.f32.mrf.mxu0
    %v325 = vadd.f32 0.0, %v324
    %v326 = vpop.f32.mrf.mxu0
    %327 = vmatprep.mubr.f32.mxu0 0.0
    %328 = vmatmul.mubr.f32.gmra.mxu0 %v256
    %v329 = vpop.f32.mrf.mxu0
    %v330 = vadd.f32 0.0, %v329
    %v331 = vpop.f32.mrf.mxu0
    %332 = vdwg.mxu0
    %v334 = vsel %vm251, %v143, 0
    %v337 = vsel %vm251, %v144, 0
    %339 = vmatprep.subr.mxu0 0.0
    %340 = vmatpush1.msra.mxu0 0.0
    %341 = vmatprep.subr.mxu0 0.0
    %342 = vmatpush1.msra.mxu0 0.0
    %343 = vmatprep.subr.mxu0 0.0
    %344 = vmatpush1.msra.mxu0 0.0
    %345 = vmatprep.subr.mxu0 0.0
    %346 = vmatpush1.msra.mxu0 0.0
    %347 = vmatprep.subr.mxu0 0.0
    %348 = vmatpush1.msra.mxu0 0.0
    %349 = vmatprep.subr.mxu0 0.0
    %350 = vmatpush1.msra.mxu0 0.0
    %351 = vmatprep.subr.mxu0 0.0
    %352 = vmatpush1.msra.mxu0 0.0
    %353 = vmatprep.subr.mxu0 0.0
    %354 = vmatpush1.msra.mxu0 0.0
    %355 = vmatprep.subr.mxu0 0.0
    %356 = vmatpush1.msra.mxu0 0.0
    %357 = vmatprep.subr.mxu0 0.0
    %358 = vmatpush1.msra.mxu0 0.0
    %359 = vmatprep.subr.mxu0 0.0
    %360 = vmatpush1.msra.mxu0 0.0
    %361 = vmatprep.subr.mxu0 0.0
    %362 = vmatpush1.msra.mxu0 0.0
    %363 = vmatprep.subr.mxu0 0.0
    %364 = vmatpush1.msra.mxu0 %v246
    %365 = vmatprep.subr.mxu0 0.0
    %366 = vmatpush1.msra.mxu0 %v245
    %367 = vmatprep.subr.mxu0 0.0
    %368 = vmatpush1.msra.mxu0 %v244
    %369 = vmatprep.subr.mxu0 0.0
    %370 = vmatpush1.msra.mxu0 %v243
    %371 = vmatprep.subr.mxu0 0.0
    %372 = vmatpush2.msra.mxu0 0.0
    %373 = vmatprep.subr.mxu0 0.0
    %374 = vmatpush2.msra.mxu0 0.0
    %375 = vmatprep.subr.mxu0 0.0
    %376 = vmatpush2.msra.mxu0 0.0
    %377 = vmatprep.subr.mxu0 0.0
    %378 = vmatpush2.msra.mxu0 0.0
    %379 = vmatprep.subr.mxu0 0.0
    %380 = vmatpush2.msra.mxu0 0.0
    %381 = vmatprep.subr.mxu0 0.0
    %382 = vmatpush2.msra.mxu0 0.0
    %383 = vmatprep.subr.mxu0 0.0
    %384 = vmatpush2.msra.mxu0 0.0
    %385 = vmatprep.subr.mxu0 0.0
    %386 = vmatpush2.msra.mxu0 0.0
    %387 = vmatprep.subr.mxu0 0.0
    %388 = vmatpush2.msra.mxu0 0.0
    %389 = vmatprep.subr.mxu0 0.0
    %390 = vmatpush2.msra.mxu0 0.0
    %391 = vmatprep.subr.mxu0 0.0
    %392 = vmatpush2.msra.mxu0 0.0
    %393 = vmatprep.subr.mxu0 0.0
    %394 = vmatpush2.msra.mxu0 0.0
    %395 = vmatprep.subr.mxu0 0.0
    %396 = vmatpush2.msra.mxu0 0.0
    %397 = vmatprep.subr.mxu0 0.0
    %398 = vmatpush2.msra.mxu0 0.0
    %399 = vmatprep.subr.mxu0 0.0
    %400 = vmatpush2.msra.mxu0 0.0
    %401 = vmatprep.subr.mxu0 0.0
    %402 = vmatpush2.msra.mxu0 0.0
    %403 = vmatprep.mubr.f32.mxu0 0.0
    %404 = vmatmul.mubr.f32.gmra.mxu0 %v334
    %v405 = vpop.f32.mrf.mxu0
    %v406 = vadd.f32 %v325, %v405
    %v407 = vpop.f32.mrf.mxu0
    %408 = vmatprep.mubr.f32.mxu0 0.0
    %409 = vmatmul.mubr.f32.gmra.mxu0 %v337
    %v410 = vpop.f32.mrf.mxu0
    %v411 = vadd.f32 %v330, %v410
    %v412 = vpop.f32.mrf.mxu0
    %413 = vdwg.mxu0
    %v414 = vld [vmem:[%s8] sm:$0x1]
    %v416 = vlaneseq
    %v417 = vshrl.u32 %v416, 7
    %v418 = vsub.s32 0, %v417
    %v419 = vrot.slane %v414, %v418
    %v421 = vadd.f32 %v406, %v419
    %v422 = vadd.f32 %v411, %v419
    %vm423 = vcmask 785408
    %424 = vst.msk [vmem:[#allocation5] sm:$0xff] %vm423, %v421
    %425 = vst.msk [vmem:[#allocation5 + $0x8] sm:$0xff] %vm423, %v422
    // Predicated region
    $region42: #{tpu_custom_call.1} parent=1 // pred_check
      _
    $region43: #{tpu_custom_call.1} parent=1 // pred_check_branch
      %427 = sbr.rel (0) target = $region45
    $region44: #{tpu_custom_call.1} parent=1 // pred_region
      %s429 = ssub.s32 256, 256
      %430 = vsyncadd [#allocation4], %s429
      %s431 = sshll.u32 [#allocation5], 4
      %s432 = int_to_ptr.vmem [resolvable:$true] %s431
      %437 = dma.vmem_to_hbm [thread:$0]  %s432, 256, %s9, [#allocation4], 128, 128, 8
    $region45: #{tpu_custom_call.1} parent=1 // pred_fallthru
      _
    // Predicated region
    $region46: #{tpu_custom_call.1} parent=1 // pred_check
      _
    $region47: #{tpu_custom_call.1} parent=1 // pred_check_branch
      %439 = sbr.rel (0) target = $region49
    $region48: #{tpu_custom_call.1} parent=1 // pred_region
      %440 = dma.done [#allocation4], 256
    $region49: #{tpu_custom_call.1} parent=1 // pred_fallthru
      _
    %441 = vsyncpa [#allocation3], 1
    %442 = vsyncpa [#allocation4], 1

</llo_original>
